<compile_context>
chip_gen: v7x
topology: tpu7x:2x2x1
jax: 0.10.0
libtpu: 0.0.40
codegen_flags: <defaults>
</compile_context>

<pallas_src>
import functools
from itertools import combinations

import numpy as np
import jax
import jax.numpy as jnp
from jax.experimental import pallas as pl
from jax.experimental.pallas import tpu as pltpu


# ----------------------------- Pallas kernel --------------------------------

def _online_triplet_kernel(count_ref, x_ref, y_ref, idx_ref, out_ref,
                           d2_ref, acc_ref, *, margin, tile_t):
    """Grid = (T_tile,). Both branches are evaluated per tile from one D2."""
    t = pl.program_id(0)
    n = x_ref.shape[0]

    # ---- once: pairwise squared-distance matrix on the MXU ------------------
    @pl.when(t == 0)
    def _init():
        x = x_ref[...].astype(jnp.float32)                          # [N, D]
        y = y_ref[...].astype(jnp.float32)                          # [N, D]
        # D2[i, j] = ||x_i||^2 + ||y_j||^2 - 2 * x_i . y_j
        # fold the *2 into the O(N*D) operand, not the O(N*N) product
        g2 = jax.lax.dot_general(x + x, y, (((1,), (1,)), ((), ())),
                                 preferred_element_type=jnp.float32)  # 2 x@y^T
        xn = jnp.sum(x * x, axis=1, keepdims=True)                   # [N, 1]
        yn = jnp.sum(y * y, axis=1, keepdims=True)                   # [N, 1]
        d2_ref[...] = jnp.maximum(xn + yn.T - g2, 0.0)               # clamp >= 0
        acc_ref[...] = jnp.zeros_like(acc_ref)

    # ---- per T-tile: one-hot gather from D2 (lane-dense over triplets) ------
    idx = idx_ref[...]                                               # [3, TILE_T]
    row = jax.lax.broadcasted_iota(jnp.int32, (n, tile_t), 0)
    a_oh = (row == idx[0:1, :]).astype(jnp.float32)                  # [N, TILE_T]
    p_oh = (row == idx[1:2, :]).astype(jnp.float32)
    n_oh = (row == idx[2:3, :]).astype(jnp.float32)

    # single MXU push per tile: D2 @ [a_oh | p_oh | n_oh]
    oh = jnp.concatenate([a_oh, p_oh, n_oh], axis=1)                 # [N, 3*TILE_T]
    prod = jnp.dot(d2_ref[...], oh, preferred_element_type=jnp.float32)
    col_a = prod[:, 0:tile_t]            # D2[:, a_t]
    col_p = prod[:, tile_t:2 * tile_t]   # D2[:, p_t]
    col_n = prod[:, 2 * tile_t:]         # D2[:, n_t]

    # branch x (anchor in x, pos/neg in y):  D2[a, p], D2[a, n]
    ap_x = jnp.sum(a_oh * col_p, axis=0, keepdims=True)              # [1, TILE_T]
    an_x = jnp.sum(a_oh * col_n, axis=0, keepdims=True)
    # branch y (anchor in y, pos/neg in x):  D2[p, a], D2[n, a]  (shares col_a)
    ap_y = jnp.sum(p_oh * col_a, axis=0, keepdims=True)
    an_y = jnp.sum(n_oh * col_a, axis=0, keepdims=True)

    m = jnp.float32(margin)
    hinge = (jnp.maximum(ap_x + m - an_x, 0.0)
             + jnp.maximum(ap_y + m - an_y, 0.0))

    # validity mask rebuilt from the scalar count (no mask DMA stream)
    pos = t * tile_t + jax.lax.broadcasted_iota(jnp.int32, (1, tile_t), 1)
    valid = (pos < count_ref[0]).astype(jnp.float32)

    acc_ref[...] += hinge * valid

    # ---- last tile: single cross-lane reduce + mean --------------------------
    @pl.when(t == pl.num_programs(0) - 1)
    def _finalize():
        inv_cnt = 1.0 / count_ref[0].astype(jnp.float32)
        out_ref[...] = (jnp.sum(acc_ref[...]) * inv_cnt).reshape(1, 1)


# --------------------------- triplet selection -------------------------------

def all_triplets(labels_np):
    """Deterministic 'AllTripletSelector': for every label class, all
    (anchor, positive) combinations within the class x every negative index."""
    labels_np = np.asarray(labels_np)
    triplets = []
    for label in sorted(set(labels_np.tolist())):
        label_mask = labels_np == label
        label_indices = np.where(label_mask)[0]
        if len(label_indices) < 2:
            continue
        negative_indices = np.where(np.logical_not(label_mask))[0]
        for a, p in combinations(label_indices, 2):
            for neg in negative_indices:
                triplets.append([a, p, neg])
    if not triplets:
        return np.zeros((0, 3), dtype=np.int32)
    return np.array(triplets, dtype=np.int32)


def _next_pow2(v):
    p = 1
    while p < v:
        p <<= 1
    return p


def _pad_to(v, m):
    return ((v + m - 1) // m) * m


# ------------------------------ module wrapper --------------------------------

def online_triplet_loss(embeddings_x, embeddings_y, labels_np, margin, *,
                        tile_t=2048):
    """Forward pass of OnlineTripletLoss with an all-triplets selector.

    Both branches (anchor-in-x and anchor-in-y) use the same triplet indices
    and are evaluated in a single fused pallas_call pass over one D2 matrix.
    """
    triplets = all_triplets(labels_np)           # [T, 3] host-side selection
    t_valid = int(triplets.shape[0])
    if t_valid == 0:
        # TODO(synk): PyTorch would raise/NaN on an empty selection; we define
        # the degenerate empty-triplet loss as 0.
        return jnp.float32(0.0)

    n, d = embeddings_x.shape

    # Lane-dense triplet tiling; pad T to a power-of-two bucket (>=128) so the
    # compiled kernel is reused across nearby triplet counts.
    t_bucket = max(128, _next_pow2(t_valid))
    tile = min(int(tile_t), t_bucket)            # tile_t must be a power of two
    num_tiles = t_bucket // tile

    idx_np = np.zeros((3, t_bucket), dtype=np.int32)   # padded cols -> idx 0 (masked)
    idx_np[:, :t_valid] = triplets.T
    idx = jnp.asarray(idx_np)
    count = jnp.array([t_valid], dtype=jnp.int32)      # scalar-prefetched into SMEM

    # VMEM budget derived from the actual buffers (+ headroom for gather temps).
    d2_bytes = _pad_to(n, 8) * _pad_to(n, 128) * 4
    emb_bytes = 2 * 2 * _pad_to(n, 8) * _pad_to(d, 128) * 4
    idx_bytes = 2 * 8 * tile * 4
    acc_bytes = 8 * tile * 4
    tmp_bytes = 8 * _pad_to(n, 8) * tile * 4           # one-hots / concat / prod
    vmem_limit = int(1.5 * (d2_bytes + emb_bytes + idx_bytes + acc_bytes + tmp_bytes))
    vmem_limit = min(max(vmem_limit, 16 * 1024 * 1024), 100 * 1024 * 1024)

    kernel = functools.partial(_online_triplet_kernel,
                               margin=float(margin), tile_t=tile)

    grid_spec = pltpu.PrefetchScalarGridSpec(
        num_scalar_prefetch=1,
        grid=(num_tiles,),                                   # T tiles only
        in_specs=[
            pl.BlockSpec((n, d), lambda t, c: (0, 0)),       # embeddings_x (resident)
            pl.BlockSpec((n, d), lambda t, c: (0, 0)),       # embeddings_y (resident)
            pl.BlockSpec((3, tile), lambda t, c: (0, t)),    # triplet indices, tiled over T
        ],
        out_specs=pl.BlockSpec((1, 1), lambda t, c: (0, 0)),
        scratch_shapes=[
            pltpu.VMEM((n, n), jnp.float32),     # pairwise distance matrix D2
            pltpu.VMEM((1, tile), jnp.float32),  # lane-dense hinge accumulator
        ],
    )

    out = pl.pallas_call(
        kernel,
        out_shape=jax.ShapeDtypeStruct((1, 1), jnp.float32),
        grid_spec=grid_spec,
        compiler_params=pltpu.CompilerParams(
            dimension_semantics=("arbitrary",),   # accumulation over T tiles
            vmem_limit_bytes=vmem_limit,
        ),
    )(count, embeddings_x, embeddings_y, idx)

    return out[0, 0]


# ----------------------------------- main -------------------------------------

if __name__ == "__main__":
    key = jax.random.PRNGKey(0)
    kx, ky = jax.random.split(key)

    N, D = 8, 32                                   # batch of 8 embeddings, dim 32
    margin = 1.0
    labels = np.array([0, 0, 0, 0, 1, 1, 1, 1], dtype=np.int32)

    embeddings_x = jax.random.normal(kx, (N, D), dtype=jnp.float32)
    embeddings_y = jax.random.normal(ky, (N, D), dtype=jnp.float32)

    loss = online_triplet_loss(embeddings_x, embeddings_y, labels, margin)
    jax.block_until_ready(loss)

    # pure-JAX reference (mirrors the PyTorch forward)
    trips = all_triplets(labels)
    ap_x = jnp.sum((embeddings_x[trips[:, 0]] - embeddings_y[trips[:, 1]]) ** 2, axis=1)
    an_x = jnp.sum((embeddings_x[trips[:, 0]] - embeddings_y[trips[:, 2]]) ** 2, axis=1)
    ap_y = jnp.sum((embeddings_y[trips[:, 0]] - embeddings_x[trips[:, 1]]) ** 2, axis=1)
    an_y = jnp.sum((embeddings_y[trips[:, 0]] - embeddings_x[trips[:, 2]]) ** 2, axis=1)
    ref = (jnp.mean(jnp.maximum(ap_x + margin - an_x, 0.0))
           + jnp.mean(jnp.maximum(ap_y + margin - an_y, 0.0)))
    assert jnp.allclose(loss, ref, rtol=1e-4, atol=1e-4), (loss, ref)

    print("KERNEL_OK")
</pallas_src>

<mosaic_0001>
module attributes {stable_mosaic.version = 11 : i64} {
  func.func @_online_triplet_kernel(%arg0: i32, %arg1: memref<1xi32, #tpu.memory_space<smem>>, %arg2: memref<8x32xf32, #tpu.memory_space<vmem>>, %arg3: memref<8x32xf32, #tpu.memory_space<vmem>>, %arg4: memref<3x128xi32, #tpu.memory_space<vmem>>, %arg5: memref<1x1xf32, #tpu.memory_space<vmem>>, %arg6: memref<8x8xf32, #tpu.memory_space<vmem>>, %arg7: memref<1x128xf32, #tpu.memory_space<vmem>>) attributes {dimension_semantics = [#tpu.dimension_semantics<arbitrary>], iteration_bounds = array<i64: 1>, scalar_prefetch = 1 : i64, scratch_operands = 2 : i64, tpu.core_type = #tpu.core_type<tc>, window_params = [{pipeline_mode = #tpu.pipeline_mode<synchronous>, transform_indices = @transform_0, window_bounds = array<i64: 8, 32>}, {pipeline_mode = #tpu.pipeline_mode<synchronous>, transform_indices = @transform_1, window_bounds = array<i64: 8, 32>}, {transform_indices = @transform_2, window_bounds = array<i64: 3, 128>}, {pipeline_mode = #tpu.pipeline_mode<synchronous>, transform_indices = @transform_3, window_bounds = array<i64: 1, 1>}]} {
    %c0_i32 = arith.constant 0 : i32
    %0 = arith.cmpi eq, %arg0, %c0_i32 : i32
    %1 = arith.extui %0 : i1 to i32
    %c0_i32_0 = arith.constant 0 : i32
    %2 = arith.cmpi ne, %1, %c0_i32_0 : i32
    scf.if %2 {
      %c0_19 = arith.constant 0 : index
      %c0_20 = arith.constant 0 : index
      %65 = vector.load %arg2[%c0_19, %c0_20] : memref<8x32xf32, #tpu.memory_space<vmem>>, vector<8x32xf32>
      %c0_21 = arith.constant 0 : index
      %c0_22 = arith.constant 0 : index
      %66 = vector.load %arg3[%c0_21, %c0_22] : memref<8x32xf32, #tpu.memory_space<vmem>>, vector<8x32xf32>
      %67 = arith.addf %65, %65 : vector<8x32xf32>
      %cst_23 = arith.constant dense<0.000000e+00> : vector<8x8xf32>
      %68 = tpu.matmul %67, %66, %cst_23 {dimension_numbers = #tpu.dot_dimension_numbers<[1], [1], [0], [0], [0, 0, 1, 0], [], []>} : vector<8x32xf32>, vector<8x32xf32>, vector<8x8xf32> -> vector<8x8xf32>
      %69 = arith.mulf %65, %65 : vector<8x32xf32>
      %cst_24 = arith.constant dense<0.000000e+00> : vector<8xf32>
      %70 = vector.multi_reduction <add>, %69, %cst_24 [1] : vector<8x32xf32> to vector<8xf32>
      %71 = vector.shape_cast %70 : vector<8xf32> to vector<8x1xf32>
      %72 = arith.mulf %66, %66 : vector<8x32xf32>
      %cst_25 = arith.constant dense<0.000000e+00> : vector<8xf32>
      %73 = vector.multi_reduction <add>, %72, %cst_25 [1] : vector<8x32xf32> to vector<8xf32>
      %74 = vector.shape_cast %73 : vector<8xf32> to vector<8x1xf32>
      %75 = tpu.transpose %74, [1, 0] : vector<8x1xf32> -> vector<1x8xf32>
      %76 = vector.broadcast %71 : vector<8x1xf32> to vector<8x8xf32>
      %77 = vector.broadcast %75 : vector<1x8xf32> to vector<8x8xf32>
      %78 = arith.addf %76, %77 : vector<8x8xf32>
      %79 = arith.subf %78, %68 : vector<8x8xf32>
      %cst_26 = arith.constant 0.000000e+00 : f32
      %80 = vector.broadcast %cst_26 : f32 to vector<8x8xf32>
      %81 = arith.maximumf %79, %80 : vector<8x8xf32>
      %c0_27 = arith.constant 0 : index
      %c0_28 = arith.constant 0 : index
      %82 = vector.load %arg6[%c0_27, %c0_28] : memref<8x8xf32, #tpu.memory_space<vmem>>, vector<8x8xf32>
      tpu.vector_store %arg6[%c0_27, %c0_28], %81 {strides = array<i32>} : memref<8x8xf32, #tpu.memory_space<vmem>>, vector<8x8xf32>,
      %cst_29 = arith.constant 0.000000e+00 : f32
      %83 = vector.broadcast %cst_29 : f32 to vector<1x128xf32>
      %c0_30 = arith.constant 0 : index
      %c0_31 = arith.constant 0 : index
      %84 = vector.load %arg7[%c0_30, %c0_31] : memref<1x128xf32, #tpu.memory_space<vmem>>, vector<1x128xf32>
      tpu.vector_store %arg7[%c0_30, %c0_31], %83 {strides = array<i32>} : memref<1x128xf32, #tpu.memory_space<vmem>>, vector<1x128xf32>,
    } else {
    }
    %c0 = arith.constant 0 : index
    %c0_1 = arith.constant 0 : index
    %3 = vector.load %arg4[%c0, %c0_1] : memref<3x128xi32, #tpu.memory_space<vmem>>, vector<3x128xi32>
    %4 = tpu.iota {dimensions = array<i32: 0>} : vector<8x128xi32>
    %5 = vector.extract_strided_slice %3 {offsets = [0, 0], sizes = [1, 128], strides = [1, 1]} : vector<3x128xi32> to vector<1x128xi32>
    %6 = vector.broadcast %5 : vector<1x128xi32> to vector<8x128xi32>
    %7 = arith.cmpi eq, %4, %6 : vector<8x128xi32>
    %8 = arith.extui %7 : vector<8x128xi1> to vector<8x128xi32>
    %9 = arith.sitofp %8 : vector<8x128xi32> to vector<8x128xf32>
    %10 = vector.extract_strided_slice %3 {offsets = [1, 0], sizes = [1, 128], strides = [1, 1]} : vector<3x128xi32> to vector<1x128xi32>
    %11 = vector.broadcast %10 : vector<1x128xi32> to vector<8x128xi32>
    %12 = arith.cmpi eq, %4, %11 : vector<8x128xi32>
    %13 = arith.extui %12 : vector<8x128xi1> to vector<8x128xi32>
    %14 = arith.sitofp %13 : vector<8x128xi32> to vector<8x128xf32>
    %15 = vector.extract_strided_slice %3 {offsets = [2, 0], sizes = [1, 128], strides = [1, 1]} : vector<3x128xi32> to vector<1x128xi32>
    %16 = vector.broadcast %15 : vector<1x128xi32> to vector<8x128xi32>
    %17 = arith.cmpi eq, %4, %16 : vector<8x128xi32>
    %18 = arith.extui %17 : vector<8x128xi1> to vector<8x128xi32>
    %19 = arith.sitofp %18 : vector<8x128xi32> to vector<8x128xf32>
    %20 = tpu.concatenate %9, %14, %19 in 1 : vector<8x128xf32>, vector<8x128xf32>, vector<8x128xf32> -> vector<8x384xf32>
    %c0_2 = arith.constant 0 : index
    %c0_3 = arith.constant 0 : index
    %21 = vector.load %arg6[%c0_2, %c0_3] : memref<8x8xf32, #tpu.memory_space<vmem>>, vector<8x8xf32>
    %cst = arith.constant dense<0.000000e+00> : vector<8x384xf32>
    %22 = tpu.matmul %21, %20, %cst {dimension_numbers = #tpu.dot_dimension_numbers<[1], [0], [0], [1], [0, 0, 1, 1], [], []>} : vector<8x8xf32>, vector<8x384xf32>, vector<8x384xf32> -> vector<8x384xf32>
    %23 = vector.extract_strided_slice %22 {offsets = [0, 0], sizes = [8, 128], strides = [1, 1]} : vector<8x384xf32> to vector<8x128xf32>
    %24 = vector.extract_strided_slice %22 {offsets = [0, 128], sizes = [8, 128], strides = [1, 1]} : vector<8x384xf32> to vector<8x128xf32>
    %25 = vector.extract_strided_slice %22 {offsets = [0, 256], sizes = [8, 128], strides = [1, 1]} : vector<8x384xf32> to vector<8x128xf32>
    %26 = arith.mulf %9, %24 : vector<8x128xf32>
    %cst_4 = arith.constant dense<0.000000e+00> : vector<128xf32>
    %27 = vector.multi_reduction <add>, %26, %cst_4 [0] : vector<8x128xf32> to vector<128xf32>
    %28 = vector.shape_cast %27 : vector<128xf32> to vector<1x128xf32>
    %29 = arith.mulf %9, %25 : vector<8x128xf32>
    %cst_5 = arith.constant dense<0.000000e+00> : vector<128xf32>
    %30 = vector.multi_reduction <add>, %29, %cst_5 [0] : vector<8x128xf32> to vector<128xf32>
    %31 = vector.shape_cast %30 : vector<128xf32> to vector<1x128xf32>
    %32 = arith.mulf %14, %23 : vector<8x128xf32>
    %cst_6 = arith.constant dense<0.000000e+00> : vector<128xf32>
    %33 = vector.multi_reduction <add>, %32, %cst_6 [0] : vector<8x128xf32> to vector<128xf32>
    %34 = vector.shape_cast %33 : vector<128xf32> to vector<1x128xf32>
    %35 = arith.mulf %19, %23 : vector<8x128xf32>
    %cst_7 = arith.constant dense<0.000000e+00> : vector<128xf32>
    %36 = vector.multi_reduction <add>, %35, %cst_7 [0] : vector<8x128xf32> to vector<128xf32>
    %37 = vector.shape_cast %36 : vector<128xf32> to vector<1x128xf32>
    %cst_8 = arith.constant 1.000000e+00 : f32
    %38 = vector.broadcast %cst_8 : f32 to vector<1x128xf32>
    %39 = arith.addf %28, %38 : vector<1x128xf32>
    %40 = arith.subf %39, %31 : vector<1x128xf32>
    %cst_9 = arith.constant 0.000000e+00 : f32
    %41 = vector.broadcast %cst_9 : f32 to vector<1x128xf32>
    %42 = arith.maximumf %40, %41 : vector<1x128xf32>
    %cst_10 = arith.constant 1.000000e+00 : f32
    %43 = vector.broadcast %cst_10 : f32 to vector<1x128xf32>
    %44 = arith.addf %34, %43 : vector<1x128xf32>
    %45 = arith.subf %44, %37 : vector<1x128xf32>
    %cst_11 = arith.constant 0.000000e+00 : f32
    %46 = vector.broadcast %cst_11 : f32 to vector<1x128xf32>
    %47 = arith.maximumf %45, %46 : vector<1x128xf32>
    %48 = arith.addf %42, %47 : vector<1x128xf32>
    %c128_i32 = arith.constant 128 : i32
    %49 = arith.muli %arg0, %c128_i32 : i32
    %50 = tpu.iota {dimensions = array<i32: 1>} : vector<1x128xi32>
    %51 = vector.broadcast %49 : i32 to vector<1x128xi32>
    %52 = arith.addi %51, %50 : vector<1x128xi32>
    %c0_12 = arith.constant 0 : index
    %53 = memref.load %arg1[%c0_12] : memref<1xi32, #tpu.memory_space<smem>>
    %54 = vector.broadcast %53 : i32 to vector<1x128xi32>
    %55 = arith.cmpi slt, %52, %54 : vector<1x128xi32>
    %56 = arith.extui %55 : vector<1x128xi1> to vector<1x128xi32>
    %57 = arith.sitofp %56 : vector<1x128xi32> to vector<1x128xf32>
    %c0_13 = arith.constant 0 : index
    %c0_14 = arith.constant 0 : index
    %58 = vector.load %arg7[%c0_13, %c0_14] : memref<1x128xf32, #tpu.memory_space<vmem>>, vector<1x128xf32>
    %59 = arith.mulf %48, %57 : vector<1x128xf32>
    %60 = arith.addf %58, %59 : vector<1x128xf32>
    %c0_15 = arith.constant 0 : index
    %c0_16 = arith.constant 0 : index
    %61 = vector.load %arg7[%c0_15, %c0_16] : memref<1x128xf32, #tpu.memory_space<vmem>>, vector<1x128xf32>
    tpu.vector_store %arg7[%c0_15, %c0_16], %60 {strides = array<i32>} : memref<1x128xf32, #tpu.memory_space<vmem>>, vector<1x128xf32>,
    %c0_i32_17 = arith.constant 0 : i32
    %62 = arith.cmpi eq, %arg0, %c0_i32_17 : i32
    %63 = arith.extui %62 : i1 to i32
    %c0_i32_18 = arith.constant 0 : i32
    %64 = arith.cmpi ne, %63, %c0_i32_18 : i32
    scf.if %64 {
      %c0_19 = arith.constant 0 : index
      %65 = memref.load %arg1[%c0_19] : memref<1xi32, #tpu.memory_space<smem>>
      %66 = arith.sitofp %65 : i32 to f32
      %cst_20 = arith.constant 1.000000e+00 : f32
      %67 = arith.divf %cst_20, %66 : f32
      %c0_21 = arith.constant 0 : index
      %c0_22 = arith.constant 0 : index
      %68 = vector.load %arg7[%c0_21, %c0_22] : memref<1x128xf32, #tpu.memory_space<vmem>>, vector<1x128xf32>
      %69 = vector.shape_cast %68 : vector<1x128xf32> to vector<1x1x128xf32>
      %cst_23 = arith.constant dense<0.000000e+00> : vector<1xf32>
      %70 = vector.multi_reduction <add>, %69, %cst_23 [1, 2] : vector<1x1x128xf32> to vector<1xf32>
      %71 = vector.shape_cast %70 : vector<1xf32> to vector<1x1x1xf32>
      %72 = vector.extract %71[0, 0, 0] : f32 from vector<1x1x1xf32>
      %73 = arith.mulf %72, %67 : f32
      %74 = vector.broadcast %73 : f32 to vector<1x1xf32>
      %c0_24 = arith.constant 0 : index
      %c0_25 = arith.constant 0 : index
      %75 = vector.load %arg5[%c0_24, %c0_25] : memref<1x1xf32, #tpu.memory_space<vmem>>, vector<1x1xf32>
      tpu.vector_store %arg5[%c0_24, %c0_25], %74 {strides = array<i32>} : memref<1x1xf32, #tpu.memory_space<vmem>>, vector<1x1xf32>,
    } else {
    }
    return
  }
  func.func @transform_0(%arg0: i32, %arg1: memref<1xi32, #tpu.memory_space<smem>>) -> (i32, i32) {
    %c0_i32 = arith.constant 0 : i32
    %c0_i32_0 = arith.constant 0 : i32
    %c0_i32_1 = arith.constant 0 : i32
    return %c0_i32, %c0_i32_0 : i32, i32
  }
  func.func @transform_1(%arg0: i32, %arg1: memref<1xi32, #tpu.memory_space<smem>>) -> (i32, i32) {
    %c0_i32 = arith.constant 0 : i32
    %c0_i32_0 = arith.constant 0 : i32
    %c0_i32_1 = arith.constant 0 : i32
    return %c0_i32, %c0_i32_0 : i32, i32
  }
  func.func @transform_2(%arg0: i32, %arg1: memref<1xi32, #tpu.memory_space<smem>>) -> (i32, i32) {
    %c0_i32 = arith.constant 0 : i32
    %c0_i32_0 = arith.constant 0 : i32
    return %c0_i32, %arg0 : i32, i32
  }
  func.func @transform_3(%arg0: i32, %arg1: memref<1xi32, #tpu.memory_space<smem>>) -> (i32, i32) {
    %c0_i32 = arith.constant 0 : i32
    %c0_i32_0 = arith.constant 0 : i32
    %c0_i32_1 = arith.constant 0 : i32
    return %c0_i32, %c0_i32_0 : i32, i32
  }
}

</mosaic_0001>

<llo_original>
// kernel: tpu_custom_call.1
$region0: #{tpu_custom_call.1}
  #allocation0 [shape = 'u32[]', space=smem, size = 0x4, offset = 0x4, fixed_abs, tag = 'smem constant byte address 0x4 - core index']
  #allocation1 [shape = 'u32[144,128]{1,0:T(1,128)}', space=vmem, size = 0x12000, scoped, tag = 'internal scratch']
  #allocation2 [shape = 'f32[8,8]{1,0:T(8,128)}', space=vmem, size = 0x1000, scoped, tag = 'scratch operand']
  #allocation3 [shape = 'f32[1,128]{1,0:T(1,128)}', space=vmem, size = 0x200, scoped, tag = 'scratch operand']
  #allocation4 [shape = 's32[1]{0}', space=sflag, size = 0x4, scoped, tag = 'scoped memory for tpu_custom_call.1']
  #allocation5 [shape = 's32[1]{0:T(128)S(6)}', space=smem, size = 0x200, scoped, tag = 'prefetched SMEM operand 0']
  %s0 = inlined_call_operand.<no memory space> [shape: s32[1], index: 0, kind: input, shape index: {}]
  %s1 = inlined_call_operand.hbm [shape: f32[8,32], index: 1, kind: input, shape index: {}]
  %s2 = inlined_call_operand.hbm [shape: f32[8,32], index: 2, kind: input, shape index: {}]
  %s3 = inlined_call_operand.vmem [shape: s32[3,128], index: 3, kind: input, shape index: {}]
  %s4 = inlined_call_operand.hbm [shape: f32[1,1], index: 4, kind: output, shape index: {}]
  %s5 = sld [smem:[#allocation0]]
  $region38: #{tpu_custom_call.1} parent=0
    _
  %s7 = ssub.s32 1, %s5
  %s8 = scalar_select 0, %s7, %s5
  %9 = sst [smem:[#allocation5]] %s0
  $region1: #{tpu_custom_call.1} parent=0
    #allocation6 [shape = 'u8[4096]{0}', space=vmem, size = 0x1000, scoped, tag = 'input window, operand 1, single buffered']
    #allocation7 [shape = 's32[1]{0}', space=sflag, size = 0x4, scoped, tag = 'scoped memory for tpu_custom_call.1']
    #allocation8 [shape = 's32[1]{0}', space=sflag, size = 0x4, scoped, tag = 'scoped memory for tpu_custom_call.1']
    #allocation9 [shape = 'u8[4096]{0}', space=vmem, size = 0x1000, scoped, tag = 'input window, operand 2, single buffered']
    #allocation10 [shape = 's32[1]{0}', space=sflag, size = 0x4, scoped, tag = 'scoped memory for tpu_custom_call.1']
    #allocation11 [shape = 'u8[512]{0}', space=vmem, size = 0x400, scoped, tag = 'output window, operand 0, single buffered']
    %10 = vsyncpa [#allocation7], 0
    %11 = vsyncpa [#allocation10], 0
    %12 = vsyncpa [#allocation8], 0
    // Predicated region
    $region2: #{tpu_custom_call.1} parent=1 // pred_check
      _
    $region3: #{tpu_custom_call.1} parent=1 // pred_check_branch
      %14 = sbr.rel (0) target = $region5
    $region4: #{tpu_custom_call.1} parent=1 // pred_region
      %s16 = ssub.s32 128, 128
      %17 = vsyncadd [#allocation7], %s16
      %s19 = sshll.u32 [#allocation6], 4
      %s20 = int_to_ptr.vmem [resolvable:$true] %s19
      %22 = dma.hbm_to_vmem [thread:$0]  %s1, 128, %s20, [#allocation7]
    $region5: #{tpu_custom_call.1} parent=1 // pred_fallthru
      _
    // Predicated region
    $region6: #{tpu_custom_call.1} parent=1 // pred_check
      _
    $region7: #{tpu_custom_call.1} parent=1 // pred_check_branch
      %24 = sbr.rel (0) target = $region9
    $region8: #{tpu_custom_call.1} parent=1 // pred_region
      %s26 = ssub.s32 128, 128
      %27 = vsyncadd [#allocation10], %s26
      %s29 = sshll.u32 [#allocation9], 4
      %s30 = int_to_ptr.vmem [resolvable:$true] %s29
      %32 = dma.hbm_to_vmem [thread:$0]  %s2, 128, %s30, [#allocation10]
    $region9: #{tpu_custom_call.1} parent=1 // pred_fallthru
      _
    // Predicated region
    $region10: #{tpu_custom_call.1} parent=1 // pred_check
      _
    $region11: #{tpu_custom_call.1} parent=1 // pred_check_branch
      %34 = sbr.rel (0) target = $region13
    $region12: #{tpu_custom_call.1} parent=1 // pred_region
      _
    $region13: #{tpu_custom_call.1} parent=1 // pred_fallthru
      _
    // Predicated region
    $region14: #{tpu_custom_call.1} parent=1 // pred_check
      _
    $region15: #{tpu_custom_call.1} parent=1 // pred_check_branch
      %36 = sbr.rel (0) target = $region17
    $region16: #{tpu_custom_call.1} parent=1 // pred_region
      %37 = dma.done [#allocation7], 128
    $region17: #{tpu_custom_call.1} parent=1 // pred_fallthru
      _
    // Predicated region
    $region18: #{tpu_custom_call.1} parent=1 // pred_check
      _
    $region19: #{tpu_custom_call.1} parent=1 // pred_check_branch
      %39 = sbr.rel (0) target = $region21
    $region20: #{tpu_custom_call.1} parent=1 // pred_region
      %40 = dma.done [#allocation10], 128
    $region21: #{tpu_custom_call.1} parent=1 // pred_fallthru
      _
    %p41 = scmp.eq.s32.totalorder 0, 0
    // Predicated region
    $region22: #{tpu_custom_call.1} parent=1 // pred_check
      %p42 = pneg %p41
    $region23: #{tpu_custom_call.1} parent=1 // pred_check_branch
      %44 = sbr.rel (%p42) target = $region25
    $region24: #{tpu_custom_call.1} parent=1 // pred_region
      %v45 = vld [vmem:[#allocation6] sm:$0xff]
      %v46 = vld [vmem:[#allocation9] sm:$0xff]
      %v47 = vadd.f32 %v45, %v45
      %vm48 = vcmask 261120
      %v50 = vsel %vm48, %v47, 0
      %v53 = vsel %vm48, %v46, 0
      %55 = vmatprep.subr.mxu0 0.0
      %56 = vmatpush1.xpose.msra.mxu0 %v53
      %57 = vmatprep.subr.mxu0 0.0
      %58 = vmatpush1.xpose.msra.mxu0 0.0
      %59 = vmatprep.subr.mxu0 0.0
      %60 = vmatpush1.xpose.msra.mxu0 0.0
      %61 = vmatprep.subr.mxu0 0.0
      %62 = vmatpush1.xpose.msra.mxu0 0.0
      %63 = vmatprep.subr.mxu0 0.0
      %64 = vmatpush1.xpose.msra.mxu0 0.0
      %65 = vmatprep.subr.mxu0 0.0
      %66 = vmatpush1.xpose.msra.mxu0 0.0
      %67 = vmatprep.subr.mxu0 0.0
      %68 = vmatpush1.xpose.msra.mxu0 0.0
      %69 = vmatprep.subr.mxu0 0.0
      %70 = vmatpush1.xpose.msra.mxu0 0.0
      %71 = vmatprep.subr.mxu0 0.0
      %72 = vmatpush1.xpose.msra.mxu0 0.0
      %73 = vmatprep.subr.mxu0 0.0
      %74 = vmatpush1.xpose.msra.mxu0 0.0
      %75 = vmatprep.subr.mxu0 0.0
      %76 = vmatpush1.xpose.msra.mxu0 0.0
      %77 = vmatprep.subr.mxu0 0.0
      %78 = vmatpush1.xpose.msra.mxu0 0.0
      %79 = vmatprep.subr.mxu0 0.0
      %80 = vmatpush1.xpose.msra.mxu0 0.0
      %81 = vmatprep.subr.mxu0 0.0
      %82 = vmatpush1.xpose.msra.mxu0 0.0
      %83 = vmatprep.subr.mxu0 0.0
      %84 = vmatpush1.xpose.msra.mxu0 0.0
      %85 = vmatprep.subr.mxu0 0.0
      %86 = vmatpush1.xpose.msra.mxu0 0.0
      %87 = vmatprep.subr.mxu0 0.0
      %88 = vmatpush1.xpose.msra.mxu0 0.0
      %89 = vmatprep.subr.mxu0 0.0
      %90 = vmatpush1.xpose.msra.mxu0 0.0
      %91 = vmatprep.subr.mxu0 0.0
      %92 = vmatpush1.xpose.msra.mxu0 0.0
      %93 = vmatprep.subr.mxu0 0.0
      %94 = vmatpush1.xpose.msra.mxu0 0.0
      %95 = vmatprep.subr.mxu0 0.0
      %96 = vmatpush1.xpose.msra.mxu0 0.0
      %97 = vmatprep.subr.mxu0 0.0
      %98 = vmatpush1.xpose.msra.mxu0 0.0
      %99 = vmatprep.subr.mxu0 0.0
      %100 = vmatpush1.xpose.msra.mxu0 0.0
      %101 = vmatprep.subr.mxu0 0.0
      %102 = vmatpush1.xpose.msra.mxu0 0.0
      %103 = vmatprep.subr.mxu0 0.0
      %104 = vmatpush1.xpose.msra.mxu0 0.0
      %105 = vmatprep.subr.mxu0 0.0
      %106 = vmatpush1.xpose.msra.mxu0 0.0
      %107 = vmatprep.subr.mxu0 0.0
      %108 = vmatpush1.xpose.msra.mxu0 0.0
      %109 = vmatprep.subr.mxu0 0.0
      %110 = vmatpush1.xpose.msra.mxu0 0.0
      %111 = vmatprep.subr.mxu0 0.0
      %112 = vmatpush1.xpose.msra.mxu0 0.0
      %113 = vmatprep.subr.mxu0 0.0
      %114 = vmatpush1.xpose.msra.mxu0 0.0
      %115 = vmatprep.subr.mxu0 0.0
      %116 = vmatpush1.xpose.msra.mxu0 0.0
      %117 = vmatprep.subr.mxu0 0.0
      %118 = vmatpush1.xpose.msra.mxu0 0.0
      %119 = vmatprep.mubr.f32.mxu0 0.0
      %120 = vmatmul.mubr.f32.gmra.mrb[0].mxu0 %v50
      %v121 = vpop.f32.mrb[0].mxu0
      %v122 = vadd.f32 0.0, %v121
      %v123 = vpop.f32.mrb[0].mxu0
      %124 = vdwg.mxu0
      %v125 = vmul.f32 %v45, %v45
      %v126 = vsel %vm48, %v125, 0.0
      %127 = vadd.xlane.f32.xlu0 %v126
      %v128 = vpop.xlane.xlu0 %127
      %v129 = vmul.f32 %v46, %v46
      %v130 = vsel %vm48, %v129, 0.0
      %131 = vadd.xlane.f32.xlu0 %v130
      %v132 = vpop.xlane.xlu0 %131
      %133 = vxpose.xlu0.b32.start [1/16] %v132, 128
      %134 = vxpose.xlu0.b32.cont [2/16] 0.0, 128
      %135 = vxpose.xlu0.b32.cont [3/16] 0.0, 128
      %136 = vxpose.xlu0.b32.cont [4/16] 0.0, 128
      %137 = vxpose.xlu0.b32.cont [5/16] 0.0, 128
      %138 = vxpose.xlu0.b32.cont [6/16] 0.0, 128
      %139 = vxpose.xlu0.b32.cont [7/16] 0.0, 128
      %140 = vxpose.xlu0.b32.cont [8/16] 0.0, 128
      %141 = vxpose.xlu0.b32.cont [9/16] 0.0, 128
      %142 = vxpose.xlu0.b32.cont [10/16] 0.0, 128
      %143 = vxpose.xlu0.b32.cont [11/16] 0.0, 128
      %144 = vxpose.xlu0.b32.cont [12/16] 0.0, 128
      %145 = vxpose.xlu0.b32.cont [13/16] 0.0, 128
      %146 = vxpose.xlu0.b32.cont [14/16] 0.0, 128
      %147 = vxpose.xlu0.b32.cont [15/16] 0.0, 128
      %148 = vxpose.xlu0.b32.end [16/16] 0.0, 128
      %v149 = vpop.trf.xlu0
      %v150 = vpop.trf.xlu0
      %v151 = vpop.trf.xlu0
      %v152 = vpop.trf.xlu0
      %v153 = vpop.trf.xlu0
      %v154 = vpop.trf.xlu0
      %v155 = vpop.trf.xlu0
      %v156 = vpop.trf.xlu0
      %v157 = vpop.trf.xlu0
      %v158 = vpop.trf.xlu0
      %v159 = vpop.trf.xlu0
      %v160 = vpop.trf.xlu0
      %v161 = vpop.trf.xlu0
      %v162 = vpop.trf.xlu0
      %v163 = vpop.trf.xlu0
      %v164 = vpop.trf.xlu0
      %v165 = vlaneseq
      %v166 = vshrl.u32 %v165, 7
      %v167 = vsub.s32 0, %v166
      %v168 = vrot.slane %v149, %v167
      %v169 = vadd.f32 %v128, %v168
      %v170 = vsub.f32 %v169, %v122
      %v171 = vmax.f32 %v170, 0.0
      %vm172 = vcmask 64512
      %173 = vst.msk [vmem:[#allocation2] sm:$0xff] %vm172, %v171
      %174 = vst [vmem:[#allocation3] sm:$0x1] 0.0
    $region25: #{tpu_custom_call.1} parent=1 // pred_fallthru
      _
    %v175 = vld [vmem:[%s3] sm:$0x7]
    %v176 = vlaneseq
    %v177 = vshrl.u32 %v176, 7
    %v178 = vlaneseq
    %v179 = vshrl.u32 %v178, 7
    %v180 = vsub.s32 0, %v179
    %v181 = vrot.slane %v175, %v180
    %vm182 = vcmp.eq.s32.totalorder %v177, %v181
    %v183 = vsel %vm182, 1, 0
    %v184 = vcvt.s32.f32 %v183
    %v185 = vlaneseq
    %v186 = vshrl.u32 %v185, 7
    %v187 = vsub.s32 1, %v186
    %v188 = vrot.slane %v175, %v187
    %vm189 = vcmp.eq.s32.totalorder %v177, %v188
    %v190 = vsel %vm189, 1, 0
    %v191 = vcvt.s32.f32 %v190
    %v192 = vlaneseq
    %v193 = vshrl.u32 %v192, 7
    %v194 = vsub.s32 2, %v193
    %v195 = vrot.slane %v175, %v194
    %vm196 = vcmp.eq.s32.totalorder %v177, %v195
    %v197 = vsel %vm196, 1, 0
    %v198 = vcvt.s32.f32 %v197
    %v199 = vld [vmem:[#allocation2] sm:$0xff]
    %vm200 = vcmask 64512
    %v202 = vsel %vm200, %v199, 0
    %204 = vmatprep.subr.mxu0 %v191
    %205 = vmatpush1.msra.mxu0 %v184
    %206 = vmatprep.subr.mxu0 0.0
    %207 = vmatpush1.msra.mxu0 0.0
    %208 = vmatprep.subr.mxu0 0.0
    %209 = vmatpush1.msra.mxu0 0.0
    %210 = vmatprep.subr.mxu0 0.0
    %211 = vmatpush1.msra.mxu0 0.0
    %212 = vmatprep.subr.mxu0 0.0
    %213 = vmatpush1.msra.mxu0 0.0
    %214 = vmatprep.subr.mxu0 0.0
    %215 = vmatpush1.msra.mxu0 0.0
    %216 = vmatprep.subr.mxu0 0.0
    %217 = vmatpush1.msra.mxu0 0.0
    %218 = vmatprep.subr.mxu0 0.0
    %219 = vmatpush1.msra.mxu0 0.0
    %220 = vmatprep.subr.mxu0 0.0
    %221 = vmatpush1.msra.mxu0 0.0
    %222 = vmatprep.subr.mxu0 0.0
    %223 = vmatpush1.msra.mxu0 0.0
    %224 = vmatprep.subr.mxu0 0.0
    %225 = vmatpush1.msra.mxu0 0.0
    %226 = vmatprep.subr.mxu0 0.0
    %227 = vmatpush1.msra.mxu0 0.0
    %228 = vmatprep.subr.mxu0 0.0
    %229 = vmatpush1.msra.mxu0 0.0
    %230 = vmatprep.subr.mxu0 0.0
    %231 = vmatpush1.msra.mxu0 0.0
    %232 = vmatprep.subr.mxu0 0.0
    %233 = vmatpush1.msra.mxu0 0.0
    %234 = vmatprep.subr.mxu0 0.0
    %235 = vmatpush1.msra.mxu0 0.0
    %236 = vmatprep.subr.mxu0 0.0
    %237 = vmatpush1.msra.mxu0 0.0
    %238 = vmatprep.subr.mxu0 0.0
    %239 = vmatpush1.msra.mxu0 0.0
    %240 = vmatprep.subr.mxu0 0.0
    %241 = vmatpush1.msra.mxu0 0.0
    %242 = vmatprep.subr.mxu0 0.0
    %243 = vmatpush1.msra.mxu0 0.0
    %244 = vmatprep.subr.mxu0 0.0
    %245 = vmatpush1.msra.mxu0 0.0
    %246 = vmatprep.subr.mxu0 0.0
    %247 = vmatpush1.msra.mxu0 0.0
    %248 = vmatprep.subr.mxu0 0.0
    %249 = vmatpush1.msra.mxu0 0.0
    %250 = vmatprep.subr.mxu0 0.0
    %251 = vmatpush1.msra.mxu0 0.0
    %252 = vmatprep.subr.mxu0 0.0
    %253 = vmatpush1.msra.mxu0 0.0
    %254 = vmatprep.subr.mxu0 0.0
    %255 = vmatpush1.msra.mxu0 0.0
    %256 = vmatprep.subr.mxu0 0.0
    %257 = vmatpush1.msra.mxu0 0.0
    %258 = vmatprep.subr.mxu0 0.0
    %259 = vmatpush1.msra.mxu0 0.0
    %260 = vmatprep.subr.mxu0 0.0
    %261 = vmatpush1.msra.mxu0 0.0
    %262 = vmatprep.subr.mxu0 0.0
    %263 = vmatpush1.msra.mxu0 0.0
    %264 = vmatprep.subr.mxu0 0.0
    %265 = vmatpush1.msra.mxu0 0.0
    %266 = vmatprep.subr.mxu0 0.0
    %267 = vmatpush1.msra.mxu0 0.0
    %268 = vmatprep.mubr.f32.mxu0 0.0
    %269 = vmatmul.mubr.f32.gmra.mrb[0].mxu0 %v202
    %v270 = vpop.f32.mrb[0].mxu0
    %v271 = vadd.f32 0.0, %v270
    %v272 = vpop.f32.mrb[0].mxu0
    %v273 = vadd.f32 0.0, %v272
    %274 = vdwg.mxu0
    %275 = vmatprep.subr.mxu0 0.0
    %276 = vmatpush1.msra.mxu0 %v198
    %277 = vmatprep.subr.mxu0 0.0
    %278 = vmatpush1.msra.mxu0 0.0
    %279 = vmatprep.subr.mxu0 0.0
    %280 = vmatpush1.msra.mxu0 0.0
    %281 = vmatprep.subr.mxu0 0.0
    %282 = vmatpush1.msra.mxu0 0.0
    %283 = vmatprep.subr.mxu0 0.0
    %284 = vmatpush1.msra.mxu0 0.0
    %285 = vmatprep.subr.mxu0 0.0
    %286 = vmatpush1.msra.mxu0 0.0
    %287 = vmatprep.subr.mxu0 0.0
    %288 = vmatpush1.msra.mxu0 0.0
    %289 = vmatprep.subr.mxu0 0.0
    %290 = vmatpush1.msra.mxu0 0.0
    %291 = vmatprep.subr.mxu0 0.0
    %292 = vmatpush1.msra.mxu0 0.0
    %293 = vmatprep.subr.mxu0 0.0
    %294 = vmatpush1.msra.mxu0 0.0
    %295 = vmatprep.subr.mxu0 0.0
    %296 = vmatpush1.msra.mxu0 0.0
    %297 = vmatprep.subr.mxu0 0.0
    %298 = vmatpush1.msra.mxu0 0.0
    %299 = vmatprep.subr.mxu0 0.0
    %300 = vmatpush1.msra.mxu0 0.0
    %301 = vmatprep.subr.mxu0 0.0
    %302 = vmatpush1.msra.mxu0 0.0
    %303 = vmatprep.subr.mxu0 0.0
    %304 = vmatpush1.msra.mxu0 0.0
    %305 = vmatprep.subr.mxu0 0.0
    %306 = vmatpush1.msra.mxu0 0.0
    %307 = vmatprep.subr.mxu0 0.0
    %308 = vmatpush1.msra.mxu0 0.0
    %309 = vmatprep.subr.mxu0 0.0
    %310 = vmatpush1.msra.mxu0 0.0
    %311 = vmatprep.subr.mxu0 0.0
    %312 = vmatpush1.msra.mxu0 0.0
    %313 = vmatprep.subr.mxu0 0.0
    %314 = vmatpush1.msra.mxu0 0.0
    %315 = vmatprep.subr.mxu0 0.0
    %316 = vmatpush1.msra.mxu0 0.0
    %317 = vmatprep.subr.mxu0 0.0
    %318 = vmatpush1.msra.mxu0 0.0
    %319 = vmatprep.subr.mxu0 0.0
    %320 = vmatpush1.msra.mxu0 0.0
    %321 = vmatprep.subr.mxu0 0.0
    %322 = vmatpush1.msra.mxu0 0.0
    %323 = vmatprep.subr.mxu0 0.0
    %324 = vmatpush1.msra.mxu0 0.0
    %325 = vmatprep.subr.mxu0 0.0
    %326 = vmatpush1.msra.mxu0 0.0
    %327 = vmatprep.subr.mxu0 0.0
    %328 = vmatpush1.msra.mxu0 0.0
    %329 = vmatprep.subr.mxu0 0.0
    %330 = vmatpush1.msra.mxu0 0.0
    %331 = vmatprep.subr.mxu0 0.0
    %332 = vmatpush1.msra.mxu0 0.0
    %333 = vmatprep.subr.mxu0 0.0
    %334 = vmatpush1.msra.mxu0 0.0
    %335 = vmatprep.subr.mxu0 0.0
    %336 = vmatpush1.msra.mxu0 0.0
    %337 = vmatprep.subr.mxu0 0.0
    %338 = vmatpush1.msra.mxu0 0.0
    %339 = vmatprep.mubr.f32.mxu0 0.0
    %340 = vmatmul.mubr.f32.gmra.mrb[0].mxu0 %v202
    %v341 = vpop.f32.mrb[0].mxu0
    %v342 = vadd.f32 0.0, %v341
    %v343 = vpop.f32.mrb[0].mxu0
    %344 = vdwg.mxu0
    %v345 = vmul.f32 %v184, %v273
    %v346 = vrot.slane %v345, 4
    %v347 = vadd.f32 %v345, %v346
    %v348 = vrot.slane %v347, 2
    %v349 = vadd.f32 %v347, %v348
    %v350 = vrot.slane %v349, 1
    %v351 = vadd.f32 %v349, %v350
    %v352 = vmul.f32 %v184, %v342
    %v353 = vrot.slane %v352, 4
    %v354 = vadd.f32 %v352, %v353
    %v355 = vrot.slane %v354, 2
    %v356 = vadd.f32 %v354, %v355
    %v357 = vrot.slane %v356, 1
    %v358 = vadd.f32 %v356, %v357
    %v359 = vmul.f32 %v191, %v271
    %v360 = vrot.slane %v359, 4
    %v361 = vadd.f32 %v359, %v360
    %v362 = vrot.slane %v361, 2
    %v363 = vadd.f32 %v361, %v362
    %v364 = vrot.slane %v363, 1
    %v365 = vadd.f32 %v363, %v364
    %v366 = vmul.f32 %v198, %v271
    %v367 = vrot.slane %v366, 4
    %v368 = vadd.f32 %v366, %v367
    %v369 = vrot.slane %v368, 2
    %v370 = vadd.f32 %v368, %v369
    %v371 = vrot.slane %v370, 1
    %v372 = vadd.f32 %v370, %v371
    %v373 = vadd.f32 %v351, 1.0
    %v374 = vsub.f32 %v373, %v358
    %v375 = vmax.f32 %v374, 0.0
    %v376 = vadd.f32 %v365, 1.0
    %v377 = vsub.f32 %v376, %v372
    %v378 = vmax.f32 %v377, 0.0
    %v379 = vadd.f32 %v375, %v378
    %s380 = smul.u32 0, 128
    %v381 = vlaneseq
    %v382 = vand.u32 %v381, 127
    %v383 = vstv %s380
    %v384 = vadd.s32 %v383, %v382
    %s385 = sld [smem:[#allocation5]]
    %v386 = vstv %s385
    %vm387 = vcmp.lt.s32.totalorder %v384, %v386
    %v388 = vsel %vm387, 1, 0
    %v389 = vcvt.s32.f32 %v388
    %v390 = vld [vmem:[#allocation3] sm:$0x1]
    %v391 = vmul.f32 %v379, %v389
    %v392 = vadd.f32 %v390, %v391
    %393 = vst [vmem:[#allocation3] sm:$0x1] %v392
    // Predicated region
    $region26: #{tpu_custom_call.1} parent=1 // pred_check
      %p394 = pneg %p41
    $region27: #{tpu_custom_call.1} parent=1 // pred_check_branch
      %396 = sbr.rel (%p394) target = $region29
    $region28: #{tpu_custom_call.1} parent=1 // pred_region
      %s397 = sld [smem:[#allocation5]]
      %s398 = scvt.s32.f32 %s397
      %v399 = vstv %s398
      %v400 = vrcp.pop %v399
      %s401 = vtos %v400
      %v402 = vld [vmem:[#allocation3] sm:$0x1]
      %vm403 = vcmask 1040384
      %v404 = vsel %vm403, %v402, 0.0
      %405 = vadd.xlane.f32.xlu0 %v404
      %v406 = vpop.xlane.xlu0 %405
      %v407 = vrot.slane %v406, 4
      %v408 = vadd.f32 %v406, %v407
      %v409 = vrot.slane %v408, 2
      %v410 = vadd.f32 %v408, %v409
      %v411 = vrot.slane %v410, 1
      %v412 = vadd.f32 %v410, %v411
      %s413 = vtos %v412
      %s414 = smul.f32 %s413, %s401
      %v415 = vstv %s414
      %vm416 = vcmask 0
      %417 = vst.msk [vmem:[#allocation11] sm:$0x1] %vm416, %v415
    $region29: #{tpu_custom_call.1} parent=1 // pred_fallthru
      _
    // Predicated region
    $region30: #{tpu_custom_call.1} parent=1 // pred_check
      _
    $region31: #{tpu_custom_call.1} parent=1 // pred_check_branch
      %419 = sbr.rel (0) target = $region33
    $region32: #{tpu_custom_call.1} parent=1 // pred_region
      %s421 = ssub.s32 16, 16
      %422 = vsyncadd [#allocation8], %s421
      %s424 = sshll.u32 [#allocation11], 4
      %s425 = int_to_ptr.vmem [resolvable:$true] %s424
      %427 = dma.vmem_to_hbm [thread:$0]  %s425, 16, %s4, [#allocation8]
    $region33: #{tpu_custom_call.1} parent=1 // pred_fallthru
      _
    // Predicated region
    $region34: #{tpu_custom_call.1} parent=1 // pred_check
      _
    $region35: #{tpu_custom_call.1} parent=1 // pred_check_branch
      %429 = sbr.rel (0) target = $region37
    $region36: #{tpu_custom_call.1} parent=1 // pred_region
      %430 = dma.done [#allocation8], 16
    $region37: #{tpu_custom_call.1} parent=1 // pred_fallthru
      _
    %431 = vsyncpa [#allocation7], 1
    %432 = vsyncpa [#allocation10], 1
    %433 = vsyncpa [#allocation8], 1

</llo_original>
